<compile_context>
chip_gen: v7x
topology: tpu7x:2x2x1
jax: 0.10.0
libtpu: 0.0.40
codegen_flags: <defaults>
</compile_context>

<pallas_src>
import jax
import jax.numpy as jnp
from jax.experimental import pallas as pl
from jax.experimental.pallas import tpu as pltpu


def mlp_kernel(x_ref, w1_ref, b1_ref, w2_ref, b2_ref, o_ref):
    # fc1: (TB, 60) @ (60, 128) + (1, 128), then ReLU
    h = jnp.dot(x_ref[...], w1_ref[...], preferred_element_type=jnp.float32)
    h = jnp.maximum(h + b1_ref[...], 0.0)
    # fc2: (TB, 128) @ (128, 3) + (1, 3), then sigmoid (EUP transcendental path)
    z = jnp.dot(h, w2_ref[...], preferred_element_type=jnp.float32) + b2_ref[...]
    o_ref[...] = jax.nn.sigmoid(z).astype(o_ref.dtype)


def neural_network_forward(x, w1, b1, w2, b2, *, tb_max=2048):
    """x: (B, 60) f32; w1: (60,128); b1: (1,128); w2: (128,3); b2: (1,3) -> (B, 3) f32."""
    B, F = x.shape
    H = w1.shape[1]
    O = w2.shape[1]

    # Batch tile: large enough to amortize the ~0.35 us per-grid-step overhead, but
    # never larger than the (padded) batch so tiny batches run as one grid step.
    # Keep TB a multiple of 8 (sublane granularity).
    TB = min(tb_max, max(8, B))
    TB = ((TB + 7) // 8) * 8
    Bp = pl.cdiv(B, TB) * TB
    if Bp != B:
        # Zero-pad the tail tile; the padded rows are computed but sliced off below.
        x = jnp.pad(x, ((0, Bp - B), (0, 0)))

    out = pl.pallas_call(
        mlp_kernel,
        out_shape=jax.ShapeDtypeStruct((Bp, O), jnp.float32),
        grid=(Bp // TB,),
        in_specs=[
            pl.BlockSpec((TB, F), lambda i: (i, 0)),  # x: batch-tiled, pipelined
            pl.BlockSpec((F, H), lambda i: (0, 0)),   # w1: VMEM-resident, DMA'd once
            pl.BlockSpec((1, H), lambda i: (0, 0)),   # b1: resident
            pl.BlockSpec((H, O), lambda i: (0, 0)),   # w2: resident
            pl.BlockSpec((1, O), lambda i: (0, 0)),   # b2: resident
        ],
        out_specs=pl.BlockSpec((TB, O), lambda i: (i, 0)),
        compiler_params=pltpu.CompilerParams(
            # Batch rows are independent -> shard the grid across v7x's 2 TensorCores.
            dimension_semantics=("parallel",),
        ),
    )(x, w1, b1, w2, b2)
    return out[:B] if Bp != B else out


def init_params(key):
    """Deterministic init mirroring nn.Linear default (uniform +/- 1/sqrt(fan_in))."""
    k1, k2, k3, k4 = jax.random.split(key, 4)
    bound1 = 1.0 / jnp.sqrt(60.0)
    bound2 = 1.0 / jnp.sqrt(128.0)
    # stored as (in, out): PyTorch's W.T
    w1 = jax.random.uniform(k1, (60, 128), jnp.float32, -bound1, bound1)
    b1 = jax.random.uniform(k2, (1, 128), jnp.float32, -bound1, bound1)
    w2 = jax.random.uniform(k3, (128, 3), jnp.float32, -bound2, bound2)
    b2 = jax.random.uniform(k4, (1, 3), jnp.float32, -bound2, bound2)
    return w1, b1, w2, b2


if __name__ == "__main__":
    key = jax.random.PRNGKey(0)
    kx_small, kp, kx_big = jax.random.split(key, 3)
    w1, b1, w2, b2 = init_params(kp)

    def ref_fn(xx):
        return jax.nn.sigmoid(jnp.maximum(xx @ w1 + b1, 0.0) @ w2 + b2)

    # Small-batch case (matches the original test; single grid step).
    B_small = 8
    x_small = jax.random.normal(kx_small, (B_small, 60), jnp.float32)
    out_small = jax.block_until_ready(
        neural_network_forward(x_small, w1, b1, w2, b2))
    assert out_small.shape == (B_small, 3)
    assert jnp.allclose(out_small, ref_fn(x_small), atol=1e-5, rtol=1e-5)

    # Larger batch: multi-step pipelined grid with a non-divisible tail tile.
    B_big = 4100
    x_big = jax.random.normal(kx_big, (B_big, 60), jnp.float32)
    out_big = jax.block_until_ready(
        neural_network_forward(x_big, w1, b1, w2, b2))
    assert out_big.shape == (B_big, 3)
    assert jnp.allclose(out_big, ref_fn(x_big), atol=1e-5, rtol=1e-5)

    print("KERNEL_OK")
</pallas_src>

<mosaic_0001>
module attributes {stable_mosaic.version = 11 : i64} {
  func.func @mlp_kernel(%arg0: i32, %arg1: memref<8x60xf32, #tpu.memory_space<vmem>>, %arg2: memref<60x128xf32, #tpu.memory_space<vmem>>, %arg3: memref<1x128xf32, #tpu.memory_space<vmem>>, %arg4: memref<128x3xf32, #tpu.memory_space<vmem>>, %arg5: memref<1x3xf32, #tpu.memory_space<vmem>>, %arg6: memref<8x3xf32, #tpu.memory_space<vmem>>) attributes {dimension_semantics = [#tpu.dimension_semantics<parallel>], iteration_bounds = array<i64: 1>, scalar_prefetch = 0 : i64, scratch_operands = 0 : i64, tpu.core_type = #tpu.core_type<tc>, window_params = [{transform_indices = @transform_0, window_bounds = array<i64: 8, 60>}, {pipeline_mode = #tpu.pipeline_mode<synchronous>, transform_indices = @transform_1, window_bounds = array<i64: 60, 128>}, {pipeline_mode = #tpu.pipeline_mode<synchronous>, transform_indices = @transform_2, window_bounds = array<i64: 1, 128>}, {pipeline_mode = #tpu.pipeline_mode<synchronous>, transform_indices = @transform_3, window_bounds = array<i64: 128, 3>}, {pipeline_mode = #tpu.pipeline_mode<synchronous>, transform_indices = @transform_4, window_bounds = array<i64: 1, 3>}, {transform_indices = @transform_5, window_bounds = array<i64: 8, 3>}]} {
    %c0 = arith.constant 0 : index
    %c0_0 = arith.constant 0 : index
    %0 = vector.load %arg1[%c0, %c0_0] : memref<8x60xf32, #tpu.memory_space<vmem>>, vector<8x60xf32>
    %c0_1 = arith.constant 0 : index
    %c0_2 = arith.constant 0 : index
    %1 = vector.load %arg2[%c0_1, %c0_2] : memref<60x128xf32, #tpu.memory_space<vmem>>, vector<60x128xf32>
    %cst = arith.constant dense<0.000000e+00> : vector<8x128xf32>
    %2 = tpu.matmul %0, %1, %cst {dimension_numbers = #tpu.dot_dimension_numbers<[1], [0], [0], [1], [0, 0, 1, 1], [], []>} : vector<8x60xf32>, vector<60x128xf32>, vector<8x128xf32> -> vector<8x128xf32>
    %c0_3 = arith.constant 0 : index
    %c0_4 = arith.constant 0 : index
    %3 = vector.load %arg3[%c0_3, %c0_4] : memref<1x128xf32, #tpu.memory_space<vmem>>, vector<1x128xf32>
    %4 = vector.broadcast %3 : vector<1x128xf32> to vector<8x128xf32>
    %5 = arith.addf %2, %4 : vector<8x128xf32>
    %cst_5 = arith.constant 0.000000e+00 : f32
    %6 = vector.broadcast %cst_5 : f32 to vector<8x128xf32>
    %7 = arith.maximumf %5, %6 : vector<8x128xf32>
    %c0_6 = arith.constant 0 : index
    %c0_7 = arith.constant 0 : index
    %8 = vector.load %arg4[%c0_6, %c0_7] : memref<128x3xf32, #tpu.memory_space<vmem>>, vector<128x3xf32>
    %cst_8 = arith.constant dense<0.000000e+00> : vector<8x3xf32>
    %9 = tpu.matmul %7, %8, %cst_8 {dimension_numbers = #tpu.dot_dimension_numbers<[1], [0], [0], [1], [0, 0, 1, 1], [], []>} : vector<8x128xf32>, vector<128x3xf32>, vector<8x3xf32> -> vector<8x3xf32>
    %c0_9 = arith.constant 0 : index
    %c0_10 = arith.constant 0 : index
    %10 = vector.load %arg5[%c0_9, %c0_10] : memref<1x3xf32, #tpu.memory_space<vmem>>, vector<1x3xf32>
    %11 = vector.broadcast %10 : vector<1x3xf32> to vector<8x3xf32>
    %12 = arith.addf %9, %11 : vector<8x3xf32>
    %13 = arith.negf %12 : vector<8x3xf32>
    %14 = math.exp %13 : vector<8x3xf32>
    %cst_11 = arith.constant 1.000000e+00 : f32
    %15 = vector.broadcast %cst_11 : f32 to vector<8x3xf32>
    %16 = arith.addf %15, %14 : vector<8x3xf32>
    %17 = arith.divf %15, %16 : vector<8x3xf32>
    %c0_12 = arith.constant 0 : index
    %c0_13 = arith.constant 0 : index
    %18 = vector.load %arg6[%c0_12, %c0_13] : memref<8x3xf32, #tpu.memory_space<vmem>>, vector<8x3xf32>
    tpu.vector_store %arg6[%c0_12, %c0_13], %17 {strides = array<i32>} : memref<8x3xf32, #tpu.memory_space<vmem>>, vector<8x3xf32>,
    return
  }
  func.func @transform_0(%arg0: i32) -> (i32, i32) {
    %c0_i32 = arith.constant 0 : i32
    %c0_i32_0 = arith.constant 0 : i32
    return %arg0, %c0_i32 : i32, i32
  }
  func.func @transform_1(%arg0: i32) -> (i32, i32) {
    %c0_i32 = arith.constant 0 : i32
    %c0_i32_0 = arith.constant 0 : i32
    %c0_i32_1 = arith.constant 0 : i32
    return %c0_i32, %c0_i32_0 : i32, i32
  }
  func.func @transform_2(%arg0: i32) -> (i32, i32) {
    %c0_i32 = arith.constant 0 : i32
    %c0_i32_0 = arith.constant 0 : i32
    %c0_i32_1 = arith.constant 0 : i32
    return %c0_i32, %c0_i32_0 : i32, i32
  }
  func.func @transform_3(%arg0: i32) -> (i32, i32) {
    %c0_i32 = arith.constant 0 : i32
    %c0_i32_0 = arith.constant 0 : i32
    %c0_i32_1 = arith.constant 0 : i32
    return %c0_i32, %c0_i32_0 : i32, i32
  }
  func.func @transform_4(%arg0: i32) -> (i32, i32) {
    %c0_i32 = arith.constant 0 : i32
    %c0_i32_0 = arith.constant 0 : i32
    %c0_i32_1 = arith.constant 0 : i32
    return %c0_i32, %c0_i32_0 : i32, i32
  }
  func.func @transform_5(%arg0: i32) -> (i32, i32) {
    %c0_i32 = arith.constant 0 : i32
    %c0_i32_0 = arith.constant 0 : i32
    return %arg0, %c0_i32 : i32, i32
  }
}

</mosaic_0001>

<llo_original>
// kernel: tpu_custom_call.1
$region0: #{tpu_custom_call.1}
  #allocation0 [shape = 'u32[]', space=smem, size = 0x4, offset = 0x4, fixed_abs, tag = 'smem constant byte address 0x4 - core index']
  #allocation1 [shape = 'u32[144,128]{1,0:T(1,128)}', space=vmem, size = 0x12000, scoped, tag = 'internal scratch']
  %s0 = inlined_call_operand.vmem [shape: f32[8,60], index: 0, kind: input, shape index: {}]
  %s1 = inlined_call_operand.vmem [shape: f32[60,128], index: 1, kind: input, shape index: {}]
  %s2 = inlined_call_operand.vmem [shape: f32[1,128], index: 2, kind: input, shape index: {}]
  %s3 = inlined_call_operand.vmem [shape: f32[128,3], index: 3, kind: input, shape index: {}]
  %s4 = inlined_call_operand.vmem [shape: f32[1,3], index: 4, kind: input, shape index: {}]
  %s5 = inlined_call_operand.vmem [shape: f32[8,3], index: 5, kind: output, shape index: {}]
  %s6 = sld [smem:[#allocation0]]
  $region30: #{tpu_custom_call.1} parent=0
    _
  %s8 = ssub.s32 1, %s6
  %s9 = scalar_select 0, %s8, %s6
  // Predicated region
  $region2: #{tpu_custom_call.1} parent=0 // pred_check
    _
  $region3: #{tpu_custom_call.1} parent=0 // pred_check_branch
    %11 = sbr.rel (0) target = $region5
  $region4: #{tpu_custom_call.1} parent=0 // pred_region
    _
  $region5: #{tpu_custom_call.1} parent=0 // pred_fallthru
    _
  // Predicated region
  $region6: #{tpu_custom_call.1} parent=0 // pred_check
    _
  $region7: #{tpu_custom_call.1} parent=0 // pred_check_branch
    %13 = sbr.rel (0) target = $region9
  $region8: #{tpu_custom_call.1} parent=0 // pred_region
    _
  $region9: #{tpu_custom_call.1} parent=0 // pred_fallthru
    _
  // Predicated region
  $region10: #{tpu_custom_call.1} parent=0 // pred_check
    _
  $region11: #{tpu_custom_call.1} parent=0 // pred_check_branch
    %15 = sbr.rel (0) target = $region13
  $region12: #{tpu_custom_call.1} parent=0 // pred_region
    _
  $region13: #{tpu_custom_call.1} parent=0 // pred_fallthru
    _
  // Predicated region
  $region14: #{tpu_custom_call.1} parent=0 // pred_check
    _
  $region15: #{tpu_custom_call.1} parent=0 // pred_check_branch
    %17 = sbr.rel (0) target = $region17
  $region16: #{tpu_custom_call.1} parent=0 // pred_region
    _
  $region17: #{tpu_custom_call.1} parent=0 // pred_fallthru
    _
  // Predicated region
  $region18: #{tpu_custom_call.1} parent=0 // pred_check
    _
  $region19: #{tpu_custom_call.1} parent=0 // pred_check_branch
    %19 = sbr.rel (0) target = $region21
  $region20: #{tpu_custom_call.1} parent=0 // pred_region
    _
  $region21: #{tpu_custom_call.1} parent=0 // pred_fallthru
    _
  %v20 = vld [vmem:[%s0] sm:$0xff]
  %v21 = vld [vmem:[%s1] sm:$0xff]
  %v22 = vld [vmem:[%s1 + $0x8] sm:$0xff]
  %v23 = vld [vmem:[%s1 + $0x10] sm:$0xff]
  %v24 = vld [vmem:[%s1 + $0x18] sm:$0xff]
  %v25 = vld [vmem:[%s1 + $0x20] sm:$0xff]
  %v26 = vld [vmem:[%s1 + $0x28] sm:$0xff]
  %v27 = vld [vmem:[%s1 + $0x30] sm:$0xff]
  %v28 = vld [vmem:[%s1 + $0x38] sm:$0xf]
  %v29 = vld [vmem:[%s2] sm:$0x1]
  %v31 = vlaneseq
  %v32 = vshrl.u32 %v31, 7
  %v33 = vsub.s32 0, %v32
  %v34 = vrot.slane %v29, %v33
  %vm36 = vcmask 490496
  %v38 = vsel %vm36, %v20, 0
  %vm40 = vcmask 1043456
  %v42 = vsel %vm40, %v28, 0
  %44 = vmatprep.subr.mxu0 0.0
  %45 = vmatpush1.msra.mxu0 %v21
  %46 = vmatprep.subr.mxu0 0.0
  %47 = vmatpush1.msra.mxu0 %v22
  %48 = vmatprep.subr.mxu0 0.0
  %49 = vmatpush1.msra.mxu0 %v23
  %50 = vmatprep.subr.mxu0 0.0
  %51 = vmatpush1.msra.mxu0 %v24
  %52 = vmatprep.subr.mxu0 0.0
  %53 = vmatpush1.msra.mxu0 %v25
  %54 = vmatprep.subr.mxu0 0.0
  %55 = vmatpush1.msra.mxu0 %v26
  %56 = vmatprep.subr.mxu0 0.0
  %57 = vmatpush1.msra.mxu0 %v27
  %58 = vmatprep.subr.mxu0 0.0
  %59 = vmatpush1.msra.mxu0 %v42
  %60 = vmatprep.subr.mxu0 0.0
  %61 = vmatpush1.msra.mxu0 0.0
  %62 = vmatprep.subr.mxu0 0.0
  %63 = vmatpush1.msra.mxu0 0.0
  %64 = vmatprep.subr.mxu0 0.0
  %65 = vmatpush1.msra.mxu0 0.0
  %66 = vmatprep.subr.mxu0 0.0
  %67 = vmatpush1.msra.mxu0 0.0
  %68 = vmatprep.subr.mxu0 0.0
  %69 = vmatpush1.msra.mxu0 0.0
  %70 = vmatprep.subr.mxu0 0.0
  %71 = vmatpush1.msra.mxu0 0.0
  %72 = vmatprep.subr.mxu0 0.0
  %73 = vmatpush1.msra.mxu0 0.0
  %74 = vmatprep.subr.mxu0 0.0
  %75 = vmatpush1.msra.mxu0 0.0
  %76 = vmatprep.subr.mxu0 0.0
  %77 = vmatpush1.msra.mxu0 0.0
  %78 = vmatprep.subr.mxu0 0.0
  %79 = vmatpush1.msra.mxu0 0.0
  %80 = vmatprep.subr.mxu0 0.0
  %81 = vmatpush1.msra.mxu0 0.0
  %82 = vmatprep.subr.mxu0 0.0
  %83 = vmatpush1.msra.mxu0 0.0
  %84 = vmatprep.subr.mxu0 0.0
  %85 = vmatpush1.msra.mxu0 0.0
  %86 = vmatprep.subr.mxu0 0.0
  %87 = vmatpush1.msra.mxu0 0.0
  %88 = vmatprep.subr.mxu0 0.0
  %89 = vmatpush1.msra.mxu0 0.0
  %90 = vmatprep.subr.mxu0 0.0
  %91 = vmatpush1.msra.mxu0 0.0
  %92 = vmatprep.subr.mxu0 0.0
  %93 = vmatpush1.msra.mxu0 0.0
  %94 = vmatprep.subr.mxu0 0.0
  %95 = vmatpush1.msra.mxu0 0.0
  %96 = vmatprep.subr.mxu0 0.0
  %97 = vmatpush1.msra.mxu0 0.0
  %98 = vmatprep.subr.mxu0 0.0
  %99 = vmatpush1.msra.mxu0 0.0
  %100 = vmatprep.subr.mxu0 0.0
  %101 = vmatpush1.msra.mxu0 0.0
  %102 = vmatprep.subr.mxu0 0.0
  %103 = vmatpush1.msra.mxu0 0.0
  %104 = vmatprep.subr.mxu0 0.0
  %105 = vmatpush1.msra.mxu0 0.0
  %106 = vmatprep.subr.mxu0 0.0
  %107 = vmatpush1.msra.mxu0 0.0
  %108 = vmatprep.mubr.f32.mxu0 0.0
  %109 = vmatmul.mubr.f32.gmra.mrb[0].mxu0 %v38
  %v110 = vpop.f32.mrb[0].mxu0
  %v111 = vadd.f32 %v34, %v110
  %v112 = vpop.f32.mrb[0].mxu0
  %113 = vdwg.mxu0
  %v114 = vmax.f32 %v111, 0.0
  %v115 = vld [vmem:[%s3] sm:$0xff]
  %v116 = vld [vmem:[%s3 + $0x8] sm:$0xff]
  %v117 = vld [vmem:[%s3 + $0x10] sm:$0xff]
  %v118 = vld [vmem:[%s3 + $0x18] sm:$0xff]
  %v119 = vld [vmem:[%s3 + $0x20] sm:$0xff]
  %v120 = vld [vmem:[%s3 + $0x28] sm:$0xff]
  %v121 = vld [vmem:[%s3 + $0x30] sm:$0xff]
  %v122 = vld [vmem:[%s3 + $0x38] sm:$0xff]
  %v123 = vld [vmem:[%s3 + $0x40] sm:$0xff]
  %v124 = vld [vmem:[%s3 + $0x48] sm:$0xff]
  %v125 = vld [vmem:[%s3 + $0x50] sm:$0xff]
  %v126 = vld [vmem:[%s3 + $0x58] sm:$0xff]
  %v127 = vld [vmem:[%s3 + $0x60] sm:$0xff]
  %v128 = vld [vmem:[%s3 + $0x68] sm:$0xff]
  %v129 = vld [vmem:[%s3 + $0x70] sm:$0xff]
  %v130 = vld [vmem:[%s3 + $0x78] sm:$0xff]
  %v131 = vld [vmem:[%s4] sm:$0x1]
  %v133 = vlaneseq
  %v134 = vshrl.u32 %v133, 7
  %v135 = vsub.s32 0, %v134
  %v136 = vrot.slane %v131, %v135
  %138 = vmatprep.subr.mxu0 0.0
  %139 = vmatpush1.msra.mxu0 %v115
  %140 = vmatprep.subr.mxu0 0.0
  %141 = vmatpush1.msra.mxu0 %v116
  %142 = vmatprep.subr.mxu0 0.0
  %143 = vmatpush1.msra.mxu0 %v117
  %144 = vmatprep.subr.mxu0 0.0
  %145 = vmatpush1.msra.mxu0 %v118
  %146 = vmatprep.subr.mxu0 0.0
  %147 = vmatpush1.msra.mxu0 %v119
  %148 = vmatprep.subr.mxu0 0.0
  %149 = vmatpush1.msra.mxu0 %v120
  %150 = vmatprep.subr.mxu0 0.0
  %151 = vmatpush1.msra.mxu0 %v121
  %152 = vmatprep.subr.mxu0 0.0
  %153 = vmatpush1.msra.mxu0 %v122
  %154 = vmatprep.subr.mxu0 0.0
  %155 = vmatpush1.msra.mxu0 %v123
  %156 = vmatprep.subr.mxu0 0.0
  %157 = vmatpush1.msra.mxu0 %v124
  %158 = vmatprep.subr.mxu0 0.0
  %159 = vmatpush1.msra.mxu0 %v125
  %160 = vmatprep.subr.mxu0 0.0
  %161 = vmatpush1.msra.mxu0 %v126
  %162 = vmatprep.subr.mxu0 0.0
  %163 = vmatpush1.msra.mxu0 %v127
  %164 = vmatprep.subr.mxu0 0.0
  %165 = vmatpush1.msra.mxu0 %v128
  %166 = vmatprep.subr.mxu0 0.0
  %167 = vmatpush1.msra.mxu0 %v129
  %168 = vmatprep.subr.mxu0 0.0
  %169 = vmatpush1.msra.mxu0 %v130
  %170 = vmatprep.subr.mxu0 0.0
  %171 = vmatpush1.msra.mxu0 0.0
  %172 = vmatprep.subr.mxu0 0.0
  %173 = vmatpush1.msra.mxu0 0.0
  %174 = vmatprep.subr.mxu0 0.0
  %175 = vmatpush1.msra.mxu0 0.0
  %176 = vmatprep.subr.mxu0 0.0
  %177 = vmatpush1.msra.mxu0 0.0
  %178 = vmatprep.subr.mxu0 0.0
  %179 = vmatpush1.msra.mxu0 0.0
  %180 = vmatprep.subr.mxu0 0.0
  %181 = vmatpush1.msra.mxu0 0.0
  %182 = vmatprep.subr.mxu0 0.0
  %183 = vmatpush1.msra.mxu0 0.0
  %184 = vmatprep.subr.mxu0 0.0
  %185 = vmatpush1.msra.mxu0 0.0
  %186 = vmatprep.subr.mxu0 0.0
  %187 = vmatpush1.msra.mxu0 0.0
  %188 = vmatprep.subr.mxu0 0.0
  %189 = vmatpush1.msra.mxu0 0.0
  %190 = vmatprep.subr.mxu0 0.0
  %191 = vmatpush1.msra.mxu0 0.0
  %192 = vmatprep.subr.mxu0 0.0
  %193 = vmatpush1.msra.mxu0 0.0
  %194 = vmatprep.subr.mxu0 0.0
  %195 = vmatpush1.msra.mxu0 0.0
  %196 = vmatprep.subr.mxu0 0.0
  %197 = vmatpush1.msra.mxu0 0.0
  %198 = vmatprep.subr.mxu0 0.0
  %199 = vmatpush1.msra.mxu0 0.0
  %200 = vmatprep.subr.mxu0 0.0
  %201 = vmatpush1.msra.mxu0 0.0
  %202 = vmatprep.mubr.f32.mxu0 0.0
  %203 = vmatmul.mubr.f32.gmra.mrb[0].mxu0 %v114
  %v204 = vpop.f32.mrb[0].mxu0
  %v205 = vadd.f32 %v136, %v204
  %v206 = vpop.f32.mrb[0].mxu0
  %207 = vdwg.mxu0
  %v208 = vxor.u32 %v205, 2147483648
  %v209 = vmul.f32 %v208, 1.442695
  %v210 = vpow.pop %v209
  %v211 = vadd.f32 %v210, 1.0
  %v212 = vrcp.pop %v211
  %v213 = vmul.f32 1.0, %v212
  %vm214 = vcmask 23552
  %215 = vst.msk [vmem:[%s5] sm:$0xff] %vm214, %v213
  // Predicated region
  $region22: #{tpu_custom_call.1} parent=0 // pred_check
    _
  $region23: #{tpu_custom_call.1} parent=0 // pred_check_branch
    %217 = sbr.rel (0) target = $region25
  $region24: #{tpu_custom_call.1} parent=0 // pred_region
    _
  $region25: #{tpu_custom_call.1} parent=0 // pred_fallthru
    _
  // Predicated region
  $region26: #{tpu_custom_call.1} parent=0 // pred_check
    _
  $region27: #{tpu_custom_call.1} parent=0 // pred_check_branch
    %219 = sbr.rel (0) target = $region29
  $region28: #{tpu_custom_call.1} parent=0 // pred_region
    _
  $region29: #{tpu_custom_call.1} parent=0 // pred_fallthru
    _

</llo_original>
